<compile_context>
chip_gen: v5e
topology: v5e:2x2
jax: 0.10.0
libtpu: 0.0.40
codegen_flags: <defaults>
</compile_context>

<pallas_src>
import math

import jax
import jax.numpy as jnp
from jax.experimental import pallas as pl
from jax.experimental.pallas import tpu as pltpu

# ---- small, deterministic config (LLMConfig analogue) ----
BATCH = 2
NUM_HEAD = 4
HEAD_SIZE = 8
EMB = NUM_HEAD * HEAD_SIZE          # embedding_dim = 32
DIM_FF = 64
DECODE_IDX = 7                      # length of the all-ones KV cache
SEQ = DECODE_IDX + 1                # cache + current token
LN_EPS = 1e-5
_SCALE = 1.0 / math.sqrt(HEAD_SIZE)


def _layernorm(x, all_ones):
    """Normalize (no affine; affine is folded into downstream weights host-side).

    One MXU pass over [x ; x*x] yields sum(x) and sum(x*x) replicated across all
    lanes, so no cross-lane (XLU) reductions and no keepdims broadcasts.
    """
    xx = jnp.concatenate([x, x * x], axis=0)                           # (2B, E)
    s = jnp.dot(xx, all_ones, preferred_element_type=jnp.float32)      # (2B, E)
    mu = s[:BATCH] * (1.0 / EMB)
    ex2 = s[BATCH:] * (1.0 / EMB)
    var = ex2 - mu * mu
    return (x - mu) * jax.lax.rsqrt(var + LN_EPS)


def block_kernel(x_ref, wqkvs_ref, wmisc_ref, wff2_ref, bias_ref, o_ref):
    x = x_ref[...]                                                     # (B, E) f32
    all_ones = jnp.ones((EMB, EMB), jnp.float32)
    block_ones = wmisc_ref[:, 0:EMB]                                   # (E, E) per-head sum matrix

    # ---------- LayerNorm 1 (gamma/beta folded into wqkvs / bias row 0) ----------
    z1 = _layernorm(x, all_ones)

    # ---------- Fused QKV + per-head q-sum: one (B,32)x(32,128) MXU pass ----------
    qkvs = jnp.dot(z1, wqkvs_ref[...], preferred_element_type=jnp.float32)
    qkvs = qkvs + bias_ref[0:1, :]                                     # (B, 4E)
    q = qkvs[:, 0:EMB]
    k = qkvs[:, EMB:2 * EMB]
    v = qkvs[:, 2 * EMB:3 * EMB]
    # Score vs. every (all-ones) cached position: per-head sum(q), replicated
    # across that head's lanes (folded column block of the fused weight).
    s_cache = qkvs[:, 3 * EMB:4 * EMB] * _SCALE                        # (B, E)
    # Score vs. the freshly projected token: per-head sum(q*k), via MXU.
    s_new = jnp.dot(q * k, block_ones,
                    preferred_element_type=jnp.float32) * _SCALE       # (B, E)

    # Closed-form 2-way softmax: only two distinct logits exist
    # (s_cache repeated DECODE_IDX times, s_new once). Never build (B,H,SEQ).
    m = jnp.maximum(s_cache, s_new)
    ec = jnp.exp(s_cache - m)
    en = jnp.exp(s_new - m)
    denom = DECODE_IDX * ec + en
    # out = p_cache * ones + p_new * v  (cached values are all ones)
    head_out = (DECODE_IDX * ec + en * v) / denom                      # (B, E)
    # attention-weights dropout / out_proj dropout: eval-mode identity

    sa = jnp.dot(head_out, wmisc_ref[:, EMB:2 * EMB],                  # Wo^T
                 preferred_element_type=jnp.float32)
    x = x + sa

    # ---------- LayerNorm 2 + FeedForward (gamma/beta folded into wff1 / biases) ----------
    z2 = _layernorm(x, all_ones)
    h = jnp.dot(z2, wmisc_ref[:, 2 * EMB:2 * EMB + DIM_FF],            # diag(g2) @ Wff1^T
                preferred_element_type=jnp.float32) + bias_ref[1:2, 0:DIM_FF]
    h = jnp.maximum(h, 0.0)                                            # ReLU
    ff = jnp.dot(h, wff2_ref[...],
                 preferred_element_type=jnp.float32) + bias_ref[1:2, DIM_FF:DIM_FF + EMB]
    # FFN dropout: eval-mode identity
    o_ref[...] = x + ff


def pack_params(params):
    """One-time host-side preprocessing: transpose, fuse, fold LN affines, pack.

    Produces 4 lane-dense slabs (plus x) so the kernel sees 5 inputs instead of 13.
    """
    f32 = jnp.float32
    block_ones = jnp.kron(jnp.eye(NUM_HEAD, dtype=f32),
                          jnp.ones((HEAD_SIZE, HEAD_SIZE), f32))       # (E, E)

    wq_t, wk_t, wv_t = params["wq"].T, params["wk"].T, params["wv"].T  # (in, out)
    # [Wq^T | Wk^T | Wv^T | Wq^T @ BlockOnes]  -> (32, 128), lane-dense
    wqkvs = jnp.concatenate([wq_t, wk_t, wv_t, wq_t @ block_ones], axis=1)
    wqkvs_folded = params["g1"][:, None] * wqkvs                       # fold LN1 gamma
    bias_qkvs = params["b1"] @ wqkvs                                   # fold LN1 beta -> (128,)

    wff1_t = params["w_ff1"].T                                         # (E, F)
    wff1_folded = params["g2"][:, None] * wff1_t                       # fold LN2 gamma
    bias_ff1 = params["b2"] @ wff1_t + params["b_ff1"]                 # fold LN2 beta -> (F,)

    # [BlockOnes | Wo^T | diag(g2) @ Wff1^T] -> (32, 32+32+64) = (32, 128)
    wmisc = jnp.concatenate([block_ones, params["wo"].T, wff1_folded], axis=1)

    biases = jnp.stack([
        bias_qkvs,                                                     # row 0: (128,)
        jnp.concatenate([bias_ff1, params["b_ff2"],
                         jnp.zeros((4 * EMB - DIM_FF - EMB,), f32)]),  # row 1: (128,)
    ], axis=0)                                                         # (2, 128)

    return {
        "wqkvs": wqkvs_folded.astype(f32),      # (32, 128)
        "wmisc": wmisc.astype(f32),             # (32, 128)
        "wff2t": params["w_ff2"].T.astype(f32), # (64, 32)
        "biases": biases.astype(f32),           # (2, 128)
    }


def block_forward(x, packed):
    """x: (BATCH, 1, EMB) float32 -> (BATCH, 1, EMB) float32."""
    B, L, E = x.shape
    assert (B, L, E) == (BATCH, 1, EMB)
    vmem = pl.BlockSpec(memory_space=pltpu.MemorySpace.VMEM)
    # Working set is tiny (<40 KiB), so no grid is needed on any generation.
    # TODO(synk): if BATCH grows, add a batch grid with dimension_semantics=("parallel",)
    # so the work shards across v7x's two TensorCores.
    out = pl.pallas_call(
        block_kernel,
        out_shape=jax.ShapeDtypeStruct((B, E), jnp.float32),
        in_specs=[vmem] * 5,
        out_specs=vmem,
    )(x.reshape(B, E), packed["wqkvs"], packed["wmisc"],
      packed["wff2t"], packed["biases"])
    return out.reshape(B, 1, E)


def block_reference(x, params):
    """Pure-JAX transcription of the PyTorch forward (eval mode)."""
    def ln(t, g, b):
        mu = t.mean(-1, keepdims=True)
        var = ((t - mu) ** 2).mean(-1, keepdims=True)
        return (t - mu) / jnp.sqrt(var + LN_EPS) * g + b

    B = x.shape[0]
    xn = ln(x, params["g1"], params["b1"])
    q = (xn @ params["wq"].T).reshape(B, 1, NUM_HEAD, HEAD_SIZE)
    k = (xn @ params["wk"].T).reshape(B, 1, NUM_HEAD, HEAD_SIZE)
    v = (xn @ params["wv"].T).reshape(B, 1, NUM_HEAD, HEAD_SIZE)
    outs = []
    for h in range(NUM_HEAD):
        kt, qt, vt = k[:, :, h, :], q[:, :, h, :], v[:, :, h, :]
        kc = jnp.ones((B, DECODE_IDX, HEAD_SIZE), jnp.float32)
        vc = jnp.ones((B, DECODE_IDX, HEAD_SIZE), jnp.float32)
        fk = jnp.concatenate([kc, kt], axis=1)
        fv = jnp.concatenate([vc, vt], axis=1)
        att = (qt @ jnp.swapaxes(fk, -2, -1)) / math.sqrt(HEAD_SIZE)
        p = jax.nn.softmax(att, axis=-1)
        outs.append(p @ fv)
    sa = jnp.concatenate(outs, axis=-1) @ params["wo"].T
    x = x + sa
    xn2 = ln(x, params["g2"], params["b2"])
    hid = jnp.maximum(xn2 @ params["w_ff1"].T + params["b_ff1"], 0.0)
    ff = hid @ params["w_ff2"].T + params["b_ff2"]
    return x + ff


def init_params(key):
    ks = jax.random.split(key, 12)
    s = 0.1
    return {
        "wq": s * jax.random.normal(ks[0], (EMB, EMB), jnp.float32),
        "wk": s * jax.random.normal(ks[1], (EMB, EMB), jnp.float32),
        "wv": s * jax.random.normal(ks[2], (EMB, EMB), jnp.float32),
        "wo": s * jax.random.normal(ks[3], (EMB, EMB), jnp.float32),
        # non-trivial LN affines to exercise the host-side folding path
        "g1": 1.0 + s * jax.random.normal(ks[4], (EMB,), jnp.float32),
        "b1": s * jax.random.normal(ks[5], (EMB,), jnp.float32),
        "g2": 1.0 + s * jax.random.normal(ks[6], (EMB,), jnp.float32),
        "b2": s * jax.random.normal(ks[7], (EMB,), jnp.float32),
        "w_ff1": s * jax.random.normal(ks[8], (DIM_FF, EMB), jnp.float32),
        "b_ff1": s * jax.random.normal(ks[9], (DIM_FF,), jnp.float32),
        "w_ff2": s * jax.random.normal(ks[10], (EMB, DIM_FF), jnp.float32),
        "b_ff2": s * jax.random.normal(ks[11], (EMB,), jnp.float32),
    }


if __name__ == "__main__":
    key = jax.random.PRNGKey(0)
    k_x, k_p = jax.random.split(key)
    x = jax.random.normal(k_x, (BATCH, 1, EMB), jnp.float32)
    params = init_params(k_p)

    # One-time packing, kept out of the per-token call path.
    packed = jax.tree_util.tree_map(jax.block_until_ready, pack_params(params))

    fwd = jax.jit(block_forward)
    out = jax.block_until_ready(fwd(x, packed))

    ref = block_reference(x, params)
    assert out.shape == (BATCH, 1, EMB)
    err = float(jnp.max(jnp.abs(out - ref)))
    assert jnp.allclose(out, ref, atol=1e-4, rtol=1e-4), err
    print("KERNEL_OK")
</pallas_src>

<mosaic_0001>
module attributes {stable_mosaic.version = 11 : i64} {
  func.func @block_kernel(%arg0: memref<2x32xf32, #tpu.memory_space<vmem>>, %arg1: memref<32x128xf32, #tpu.memory_space<vmem>>, %arg2: memref<32x128xf32, #tpu.memory_space<vmem>>, %arg3: memref<64x32xf32, #tpu.memory_space<vmem>>, %arg4: memref<2x128xf32, #tpu.memory_space<vmem>>, %arg5: memref<2x32xf32, #tpu.memory_space<vmem>>) attributes {dimension_semantics = [], scalar_prefetch = 0 : i64, scratch_operands = 0 : i64, tpu.core_type = #tpu.core_type<tc>} {
    %c0 = arith.constant 0 : index
    %c0_0 = arith.constant 0 : index
    %0 = vector.load %arg0[%c0, %c0_0] : memref<2x32xf32, #tpu.memory_space<vmem>>, vector<2x32xf32>
    %cst = arith.constant 1.000000e+00 : f32
    %1 = vector.broadcast %cst : f32 to vector<32x32xf32>
    %c0_1 = arith.constant 0 : index
    %c0_2 = arith.constant 0 : index
    %2 = vector.load %arg2[%c0_1, %c0_2] : memref<32x128xf32, #tpu.memory_space<vmem>>, vector<32x32xf32>
    %3 = arith.mulf %0, %0 : vector<2x32xf32>
    %4 = tpu.concatenate %0, %3 in 0 : vector<2x32xf32>, vector<2x32xf32> -> vector<4x32xf32>
    %cst_3 = arith.constant dense<0.000000e+00> : vector<4x32xf32>
    %5 = tpu.matmul %4, %1, %cst_3 {dimension_numbers = #tpu.dot_dimension_numbers<[1], [0], [0], [1], [0, 0, 1, 1], [], []>} : vector<4x32xf32>, vector<32x32xf32>, vector<4x32xf32> -> vector<4x32xf32>
    %6 = vector.extract_strided_slice %5 {offsets = [0, 0], sizes = [2, 32], strides = [1, 1]} : vector<4x32xf32> to vector<2x32xf32>
    %cst_4 = arith.constant 3.125000e-02 : f32
    %7 = vector.broadcast %cst_4 : f32 to vector<2x32xf32>
    %8 = arith.mulf %6, %7 : vector<2x32xf32>
    %9 = vector.extract_strided_slice %5 {offsets = [2, 0], sizes = [2, 32], strides = [1, 1]} : vector<4x32xf32> to vector<2x32xf32>
    %cst_5 = arith.constant 3.125000e-02 : f32
    %10 = vector.broadcast %cst_5 : f32 to vector<2x32xf32>
    %11 = arith.mulf %9, %10 : vector<2x32xf32>
    %12 = arith.mulf %8, %8 : vector<2x32xf32>
    %13 = arith.subf %11, %12 : vector<2x32xf32>
    %14 = arith.subf %0, %8 : vector<2x32xf32>
    %cst_6 = arith.constant 9.99999974E-6 : f32
    %15 = vector.broadcast %cst_6 : f32 to vector<2x32xf32>
    %16 = arith.addf %13, %15 : vector<2x32xf32>
    %17 = math.rsqrt %16 : vector<2x32xf32>
    %18 = arith.mulf %14, %17 : vector<2x32xf32>
    %c0_7 = arith.constant 0 : index
    %c0_8 = arith.constant 0 : index
    %19 = vector.load %arg1[%c0_7, %c0_8] : memref<32x128xf32, #tpu.memory_space<vmem>>, vector<32x128xf32>
    %cst_9 = arith.constant dense<0.000000e+00> : vector<2x128xf32>
    %20 = tpu.matmul %18, %19, %cst_9 {dimension_numbers = #tpu.dot_dimension_numbers<[1], [0], [0], [1], [0, 0, 1, 1], [], []>} : vector<2x32xf32>, vector<32x128xf32>, vector<2x128xf32> -> vector<2x128xf32>
    %c0_10 = arith.constant 0 : index
    %c0_11 = arith.constant 0 : index
    %21 = vector.load %arg4[%c0_10, %c0_11] : memref<2x128xf32, #tpu.memory_space<vmem>>, vector<1x128xf32>
    %22 = vector.broadcast %21 : vector<1x128xf32> to vector<2x128xf32>
    %23 = arith.addf %20, %22 : vector<2x128xf32>
    %24 = vector.extract_strided_slice %23 {offsets = [0, 0], sizes = [2, 32], strides = [1, 1]} : vector<2x128xf32> to vector<2x32xf32>
    %25 = vector.extract_strided_slice %23 {offsets = [0, 32], sizes = [2, 32], strides = [1, 1]} : vector<2x128xf32> to vector<2x32xf32>
    %26 = vector.extract_strided_slice %23 {offsets = [0, 64], sizes = [2, 32], strides = [1, 1]} : vector<2x128xf32> to vector<2x32xf32>
    %27 = vector.extract_strided_slice %23 {offsets = [0, 96], sizes = [2, 32], strides = [1, 1]} : vector<2x128xf32> to vector<2x32xf32>
    %cst_12 = arith.constant 0.353553385 : f32
    %28 = vector.broadcast %cst_12 : f32 to vector<2x32xf32>
    %29 = arith.mulf %27, %28 : vector<2x32xf32>
    %30 = arith.mulf %24, %25 : vector<2x32xf32>
    %cst_13 = arith.constant dense<0.000000e+00> : vector<2x32xf32>
    %31 = tpu.matmul %30, %2, %cst_13 {dimension_numbers = #tpu.dot_dimension_numbers<[1], [0], [0], [1], [0, 0, 1, 1], [], []>} : vector<2x32xf32>, vector<32x32xf32>, vector<2x32xf32> -> vector<2x32xf32>
    %cst_14 = arith.constant 0.353553385 : f32
    %32 = vector.broadcast %cst_14 : f32 to vector<2x32xf32>
    %33 = arith.mulf %31, %32 : vector<2x32xf32>
    %34 = arith.maximumf %29, %33 : vector<2x32xf32>
    %35 = arith.subf %29, %34 : vector<2x32xf32>
    %36 = math.exp %35 : vector<2x32xf32>
    %37 = arith.subf %33, %34 : vector<2x32xf32>
    %38 = math.exp %37 : vector<2x32xf32>
    %cst_15 = arith.constant 7.000000e+00 : f32
    %39 = vector.broadcast %cst_15 : f32 to vector<2x32xf32>
    %40 = arith.mulf %39, %36 : vector<2x32xf32>
    %41 = arith.addf %40, %38 : vector<2x32xf32>
    %cst_16 = arith.constant 7.000000e+00 : f32
    %42 = vector.broadcast %cst_16 : f32 to vector<2x32xf32>
    %43 = arith.mulf %42, %36 : vector<2x32xf32>
    %44 = arith.mulf %38, %26 : vector<2x32xf32>
    %45 = arith.addf %43, %44 : vector<2x32xf32>
    %46 = arith.divf %45, %41 : vector<2x32xf32>
    %c0_17 = arith.constant 0 : index
    %c32 = arith.constant 32 : index
    %47 = vector.load %arg2[%c0_17, %c32] : memref<32x128xf32, #tpu.memory_space<vmem>>, vector<32x32xf32>
    %cst_18 = arith.constant dense<0.000000e+00> : vector<2x32xf32>
    %48 = tpu.matmul %46, %47, %cst_18 {dimension_numbers = #tpu.dot_dimension_numbers<[1], [0], [0], [1], [0, 0, 1, 1], [], []>} : vector<2x32xf32>, vector<32x32xf32>, vector<2x32xf32> -> vector<2x32xf32>
    %49 = arith.addf %0, %48 : vector<2x32xf32>
    %50 = arith.mulf %49, %49 : vector<2x32xf32>
    %51 = tpu.concatenate %49, %50 in 0 : vector<2x32xf32>, vector<2x32xf32> -> vector<4x32xf32>
    %cst_19 = arith.constant dense<0.000000e+00> : vector<4x32xf32>
    %52 = tpu.matmul %51, %1, %cst_19 {dimension_numbers = #tpu.dot_dimension_numbers<[1], [0], [0], [1], [0, 0, 1, 1], [], []>} : vector<4x32xf32>, vector<32x32xf32>, vector<4x32xf32> -> vector<4x32xf32>
    %53 = vector.extract_strided_slice %52 {offsets = [0, 0], sizes = [2, 32], strides = [1, 1]} : vector<4x32xf32> to vector<2x32xf32>
    %cst_20 = arith.constant 3.125000e-02 : f32
    %54 = vector.broadcast %cst_20 : f32 to vector<2x32xf32>
    %55 = arith.mulf %53, %54 : vector<2x32xf32>
    %56 = vector.extract_strided_slice %52 {offsets = [2, 0], sizes = [2, 32], strides = [1, 1]} : vector<4x32xf32> to vector<2x32xf32>
    %cst_21 = arith.constant 3.125000e-02 : f32
    %57 = vector.broadcast %cst_21 : f32 to vector<2x32xf32>
    %58 = arith.mulf %56, %57 : vector<2x32xf32>
    %59 = arith.mulf %55, %55 : vector<2x32xf32>
    %60 = arith.subf %58, %59 : vector<2x32xf32>
    %61 = arith.subf %49, %55 : vector<2x32xf32>
    %cst_22 = arith.constant 9.99999974E-6 : f32
    %62 = vector.broadcast %cst_22 : f32 to vector<2x32xf32>
    %63 = arith.addf %60, %62 : vector<2x32xf32>
    %64 = math.rsqrt %63 : vector<2x32xf32>
    %65 = arith.mulf %61, %64 : vector<2x32xf32>
    %c0_23 = arith.constant 0 : index
    %c64 = arith.constant 64 : index
    %66 = vector.load %arg2[%c0_23, %c64] : memref<32x128xf32, #tpu.memory_space<vmem>>, vector<32x64xf32>
    %cst_24 = arith.constant dense<0.000000e+00> : vector<2x64xf32>
    %67 = tpu.matmul %65, %66, %cst_24 {dimension_numbers = #tpu.dot_dimension_numbers<[1], [0], [0], [1], [0, 0, 1, 1], [], []>} : vector<2x32xf32>, vector<32x64xf32>, vector<2x64xf32> -> vector<2x64xf32>
    %c1 = arith.constant 1 : index
    %c0_25 = arith.constant 0 : index
    %68 = vector.load %arg4[%c1, %c0_25] : memref<2x128xf32, #tpu.memory_space<vmem>>, vector<1x64xf32>
    %69 = vector.broadcast %68 : vector<1x64xf32> to vector<2x64xf32>
    %70 = arith.addf %67, %69 : vector<2x64xf32>
    %cst_26 = arith.constant 0.000000e+00 : f32
    %71 = vector.broadcast %cst_26 : f32 to vector<2x64xf32>
    %72 = arith.maximumf %70, %71 : vector<2x64xf32>
    %c0_27 = arith.constant 0 : index
    %c0_28 = arith.constant 0 : index
    %73 = vector.load %arg3[%c0_27, %c0_28] : memref<64x32xf32, #tpu.memory_space<vmem>>, vector<64x32xf32>
    %cst_29 = arith.constant dense<0.000000e+00> : vector<2x32xf32>
    %74 = tpu.matmul %72, %73, %cst_29 {dimension_numbers = #tpu.dot_dimension_numbers<[1], [0], [0], [1], [0, 0, 1, 1], [], []>} : vector<2x64xf32>, vector<64x32xf32>, vector<2x32xf32> -> vector<2x32xf32>
    %c1_30 = arith.constant 1 : index
    %c64_31 = arith.constant 64 : index
    %75 = vector.load %arg4[%c1_30, %c64_31] : memref<2x128xf32, #tpu.memory_space<vmem>>, vector<1x32xf32>
    %76 = vector.broadcast %75 : vector<1x32xf32> to vector<2x32xf32>
    %77 = arith.addf %74, %76 : vector<2x32xf32>
    %78 = arith.addf %49, %77 : vector<2x32xf32>
    %c0_32 = arith.constant 0 : index
    %c0_33 = arith.constant 0 : index
    %79 = vector.load %arg5[%c0_32, %c0_33] : memref<2x32xf32, #tpu.memory_space<vmem>>, vector<2x32xf32>
    tpu.vector_store %arg5[%c0_32, %c0_33], %78 {strides = array<i32>} : memref<2x32xf32, #tpu.memory_space<vmem>>, vector<2x32xf32>,
    return
  }
}

</mosaic_0001>

<llo_original>
// kernel: block_forward.1
$region0: #{block_forward.1}
  #allocation0 [shape = 'u32[]', space=smem, size = 0x4, offset = 0x4, fixed_abs, tag = 'smem constant byte address 0x4 - core index']
  #allocation1 [shape = 'u32[72,128]{1,0:T(1,128)}', space=vmem, size = 0x9000, scoped, tag = 'internal scratch']
  %s0 = inlined_call_operand.vmem [shape: f32[2,32], index: 0, kind: input, shape index: {}]
  %s1 = inlined_call_operand.vmem [shape: f32[32,128], index: 1, kind: input, shape index: {}]
  %s2 = inlined_call_operand.vmem [shape: f32[32,128], index: 2, kind: input, shape index: {}]
  %s3 = inlined_call_operand.vmem [shape: f32[64,32], index: 3, kind: input, shape index: {}]
  %s4 = inlined_call_operand.vmem [shape: f32[2,128], index: 4, kind: input, shape index: {}]
  %s5 = inlined_call_operand.hbm [shape: f32[2,32], index: 5, kind: output, shape index: {}]
  %s6 = sld [smem:[#allocation0]]
  $region30: #{block_forward.1} parent=0
    _
  %s8 = ssub.s32 1, %s6
  %s9 = scalar_select 0, %s8, %s6
  $region1: #{block_forward.1} parent=0
    #allocation2 [shape = 'u8[1024]{0}', space=vmem, size = 0x400, scoped, tag = 'output window, operand 0, single buffered']
    #allocation3 [shape = 's32[1]{0}', space=sflag, size = 0x4, scoped, tag = 'scoped memory for block_forward.1']
    %10 = vsyncpa [#allocation3], 0
    // Predicated region
    $region2: #{block_forward.1} parent=1 // pred_check
      _
    $region3: #{block_forward.1} parent=1 // pred_check_branch
      %12 = sbr.rel (0) target = $region5
    $region4: #{block_forward.1} parent=1 // pred_region
      _
    $region5: #{block_forward.1} parent=1 // pred_fallthru
      _
    // Predicated region
    $region6: #{block_forward.1} parent=1 // pred_check
      _
    $region7: #{block_forward.1} parent=1 // pred_check_branch
      %14 = sbr.rel (0) target = $region9
    $region8: #{block_forward.1} parent=1 // pred_region
      _
    $region9: #{block_forward.1} parent=1 // pred_fallthru
      _
    // Predicated region
    $region10: #{block_forward.1} parent=1 // pred_check
      _
    $region11: #{block_forward.1} parent=1 // pred_check_branch
      %16 = sbr.rel (0) target = $region13
    $region12: #{block_forward.1} parent=1 // pred_region
      _
    $region13: #{block_forward.1} parent=1 // pred_fallthru
      _
    // Predicated region
    $region14: #{block_forward.1} parent=1 // pred_check
      _
    $region15: #{block_forward.1} parent=1 // pred_check_branch
      %18 = sbr.rel (0) target = $region17
    $region16: #{block_forward.1} parent=1 // pred_region
      _
    $region17: #{block_forward.1} parent=1 // pred_fallthru
      _
    // Predicated region
    $region18: #{block_forward.1} parent=1 // pred_check
      _
    $region19: #{block_forward.1} parent=1 // pred_check_branch
      %20 = sbr.rel (0) target = $region21
    $region20: #{block_forward.1} parent=1 // pred_region
      _
    $region21: #{block_forward.1} parent=1 // pred_fallthru
      _
    %v21 = vld [vmem:[%s0] sm:$0x3]
    %v22 = vld [vmem:[%s2] sm:$0xff]
    %v23 = vld [vmem:[%s2 + $0x8] sm:$0xff]
    %v24 = vld [vmem:[%s2 + $0x10] sm:$0xff]
    %v25 = vld [vmem:[%s2 + $0x18] sm:$0xff]
    %v26 = vmul.f32 %v21, %v21
    %v28 = vrot.slane %v26, 6
    %vm30 = vcmask 1041408
    %v31 = vsel %vm30, %v21, %v28
    %vm32 = vcmask 261120
    %v34 = vsel %vm32, %v31, 0
    %36 = vmatpush.msra.mxu0 0.0
    %37 = vmatpush.msra.mxu0 0.0
    %38 = vmatpush.msra.mxu0 0.0
    %39 = vmatpush.msra.mxu0 0.0
    %40 = vmatpush.msra.mxu0 0.0
    %41 = vmatpush.msra.mxu0 0.0
    %42 = vmatpush.msra.mxu0 0.0
    %43 = vmatpush.msra.mxu0 0.0
    %44 = vmatpush.msra.mxu0 0.0
    %45 = vmatpush.msra.mxu0 0.0
    %46 = vmatpush.msra.mxu0 0.0
    %47 = vmatpush.msra.mxu0 0.0
    %48 = vmatpush.msra.mxu0 1.0
    %49 = vmatpush.msra.mxu0 1.0
    %50 = vmatpush.msra.mxu0 1.0
    %51 = vmatpush.msra.mxu0 1.0
    %52 = vmatmul.f32.gmra.mxu0 %v34
    %v53 = vpop.f32.mrf.mxu0
    %v54 = vadd.f32 0.0, %v53
    %55 = vdwg.mxu0
    %v56 = vmul.f32 %v54, 0.03125
    %v57 = vmul.f32 %v56, %v56
    %v59 = vrot.slane %v57, 6
    %v61 = vsub.f32 %v56, %v59
    %v62 = vsub.f32 %v21, %v56
    %v63 = vadd.f32 %v61, 1e-05
    %v64 = vrsqrt.pop %v63
    %v65 = vmul.f32 %v64, %v63
    %v66 = vmul.f32 %v65, %v64
    %v67 = vmul.f32 0.5, %v66
    %v68 = vsub.f32 1.5, %v67
    %v69 = vmul.f32 %v64, %v68
    %vm70 = vweird.f32 %v63
    %vm71 = vweird.f32 %v64
    %vm72 = vmor %vm70, %vm71
    %v73 = vsel %vm72, %v64, %v69
    %v75 = vrot.slane %v73, 2
    %v77 = vmul.f32 %v62, %v75
    %v78 = vld [vmem:[%s1] sm:$0xff]
    %v79 = vld [vmem:[%s1 + $0x8] sm:$0xff]
    %v80 = vld [vmem:[%s1 + $0x10] sm:$0xff]
    %v81 = vld [vmem:[%s1 + $0x18] sm:$0xff]
    %v82 = vld [vmem:[%s4] sm:$0x1]
    %v83 = vperm.slane %v82, 0
    %v85 = vsel %vm32, %v77, 0
    %87 = vmatpush.msra.mxu0 0.0
    %88 = vmatpush.msra.mxu0 0.0
    %89 = vmatpush.msra.mxu0 0.0
    %90 = vmatpush.msra.mxu0 0.0
    %91 = vmatpush.msra.mxu0 0.0
    %92 = vmatpush.msra.mxu0 0.0
    %93 = vmatpush.msra.mxu0 0.0
    %94 = vmatpush.msra.mxu0 0.0
    %95 = vmatpush.msra.mxu0 0.0
    %96 = vmatpush.msra.mxu0 0.0
    %97 = vmatpush.msra.mxu0 0.0
    %98 = vmatpush.msra.mxu0 0.0
    %99 = vmatpush.msra.mxu0 %v81
    %100 = vmatpush.msra.mxu0 %v80
    %101 = vmatpush.msra.mxu0 %v79
    %102 = vmatpush.msra.mxu0 %v78
    %103 = vmatmul.f32.gmra.mxu0 %v85
    %v104 = vpop.f32.mrf.mxu0
    %v105 = vadd.f32 %v83, %v104
    %106 = vdwg.mxu0
    %v107 = vmul.f32 %v105, 0.35355338
    %109 = vrot.lane.b32.xlu0 %v105, 96
    %v110 = vpop.permute.xlu0 %109
    %v112 = vmul.f32 %v105, %v110
    %v114 = vsel %vm32, %v112, 0
    %116 = vmatpush.msra.mxu0 0.0
    %117 = vmatpush.msra.mxu0 0.0
    %118 = vmatpush.msra.mxu0 0.0
    %119 = vmatpush.msra.mxu0 0.0
    %120 = vmatpush.msra.mxu0 0.0
    %121 = vmatpush.msra.mxu0 0.0
    %122 = vmatpush.msra.mxu0 0.0
    %123 = vmatpush.msra.mxu0 0.0
    %124 = vmatpush.msra.mxu0 0.0
    %125 = vmatpush.msra.mxu0 0.0
    %126 = vmatpush.msra.mxu0 0.0
    %127 = vmatpush.msra.mxu0 0.0
    %128 = vmatpush.msra.mxu0 %v25
    %129 = vmatpush.msra.mxu0 %v24
    %130 = vmatpush.msra.mxu0 %v23
    %131 = vmatpush.msra.mxu0 %v22
    %132 = vmatmul.f32.gmra.mxu0 %v114
    %v133 = vpop.f32.mrf.mxu0
    %v134 = vadd.f32 0.0, %v133
    %135 = vdwg.mxu0
    %v136 = vmul.f32 %v134, 0.35355338
    %138 = vrot.lane.b32.xlu0 %v136, 96
    %v139 = vpop.permute.xlu0 %138
    %v141 = vmax.f32 %v107, %v139
    %v142 = vsub.f32 %v107, %v141
    %v143 = vmul.f32 %v142, 1.442695
    %v144 = vpow.pop %v143
    %146 = vrot.lane.b32.xlu0 %v141, 32
    %v147 = vpop.permute.xlu0 %146
    %v149 = vsub.f32 %v136, %v147
    %v150 = vmul.f32 %v149, 1.442695
    %v151 = vpow.pop %v150
    %v152 = vmul.f32 %v144, 7.0
    %154 = vrot.lane.b32.xlu0 %v151, 96
    %v155 = vpop.permute.xlu0 %154
    %v157 = vadd.f32 %v152, %v155
    %158 = vrot.lane.b32.xlu0 %v105, 64
    %v159 = vpop.permute.xlu0 %158
    %v161 = vmul.f32 %v151, %v159
    %163 = vrot.lane.b32.xlu0 %v161, 96
    %v164 = vpop.permute.xlu0 %163
    %v166 = vadd.f32 %v152, %v164
    %v167 = vrcp.pop %v157
    %v168 = vmul.f32 %v157, %v167
    %v169 = vsub.f32 1.0, %v168
    %v170 = vmul.f32 %v167, %v169
    %v171 = vadd.f32 %v167, %v170
    %vm172 = vweird.f32 %v157
    %vm173 = vweird.f32 %v167
    %vm174 = vmor %vm172, %vm173
    %v175 = vsel %vm174, %v167, %v171
    %v176 = vand.u32 2147483647, %v157
    %vm177 = vcmp.eq.f32.partialorder %v176, 8.507059e+37
    %v178 = vand.u32 %v157, 2147483648
    %v179 = vor.u32 1.1754944e-38, %v178
    %v180 = vsel %vm177, %v179, %v175
    %v181 = vmul.f32 %v166, %v180
    %183 = vrot.lane.b32.xlu0 %v181, 32
    %v184 = vpop.permute.xlu0 %183
    %189 = vrot.lane.b32.xlu0 %v22, 96
    %v190 = vpop.permute.xlu0 %189
    %191 = vrot.lane.b32.xlu0 %v23, 96
    %v192 = vpop.permute.xlu0 %191
    %193 = vrot.lane.b32.xlu0 %v24, 96
    %v194 = vpop.permute.xlu0 %193
    %195 = vrot.lane.b32.xlu0 %v25, 96
    %v196 = vpop.permute.xlu0 %195
    %v201 = vsel %vm32, %v184, 0
    %203 = vmatpush.msra.mxu0 0.0
    %204 = vmatpush.msra.mxu0 0.0
    %205 = vmatpush.msra.mxu0 0.0
    %206 = vmatpush.msra.mxu0 0.0
    %207 = vmatpush.msra.mxu0 0.0
    %208 = vmatpush.msra.mxu0 0.0
    %209 = vmatpush.msra.mxu0 0.0
    %210 = vmatpush.msra.mxu0 0.0
    %211 = vmatpush.msra.mxu0 0.0
    %212 = vmatpush.msra.mxu0 0.0
    %213 = vmatpush.msra.mxu0 0.0
    %214 = vmatpush.msra.mxu0 0.0
    %215 = vmatpush.msra.mxu0 %v196
    %216 = vmatpush.msra.mxu0 %v194
    %217 = vmatpush.msra.mxu0 %v192
    %218 = vmatpush.msra.mxu0 %v190
    %219 = vmatmul.f32.gmra.mxu0 %v201
    %v220 = vpop.f32.mrf.mxu0
    %v221 = vadd.f32 0.0, %v220
    %222 = vdwg.mxu0
    %v223 = vadd.f32 %v21, %v221
    %v224 = vmul.f32 %v223, %v223
    %v226 = vrot.slane %v224, 6
    %v228 = vsel %vm30, %v223, %v226
    %v230 = vsel %vm32, %v228, 0
    %232 = vmatpush.msra.mxu0 0.0
    %233 = vmatpush.msra.mxu0 0.0
    %234 = vmatpush.msra.mxu0 0.0
    %235 = vmatpush.msra.mxu0 0.0
    %236 = vmatpush.msra.mxu0 0.0
    %237 = vmatpush.msra.mxu0 0.0
    %238 = vmatpush.msra.mxu0 0.0
    %239 = vmatpush.msra.mxu0 0.0
    %240 = vmatpush.msra.mxu0 0.0
    %241 = vmatpush.msra.mxu0 0.0
    %242 = vmatpush.msra.mxu0 0.0
    %243 = vmatpush.msra.mxu0 0.0
    %244 = vmatpush.msra.mxu0 1.0
    %245 = vmatpush.msra.mxu0 1.0
    %246 = vmatpush.msra.mxu0 1.0
    %247 = vmatpush.msra.mxu0 1.0
    %248 = vmatmul.f32.gmra.mxu0 %v230
    %v249 = vpop.f32.mrf.mxu0
    %v250 = vadd.f32 0.0, %v249
    %251 = vdwg.mxu0
    %v252 = vmul.f32 %v250, 0.03125
    %v253 = vmul.f32 %v252, %v252
    %v255 = vrot.slane %v253, 6
    %v257 = vsub.f32 %v252, %v255
    %v258 = vsub.f32 %v223, %v252
    %v259 = vadd.f32 %v257, 1e-05
    %v260 = vrsqrt.pop %v259
    %v261 = vmul.f32 %v260, %v259
    %v262 = vmul.f32 %v261, %v260
    %v263 = vmul.f32 0.5, %v262
    %v264 = vsub.f32 1.5, %v263
    %v265 = vmul.f32 %v260, %v264
    %vm266 = vweird.f32 %v259
    %vm267 = vweird.f32 %v260
    %vm268 = vmor %vm266, %vm267
    %v269 = vsel %vm268, %v260, %v265
    %v271 = vrot.slane %v269, 2
    %v273 = vmul.f32 %v258, %v271
    %v274 = vld [vmem:[%s4 + $0x1] sm:$0x1]
    %v275 = vperm.slane %v274, 0
    %276 = vrot.lane.b32.xlu0 %v22, 64
    %v277 = vpop.permute.xlu0 %276
    %278 = vrot.lane.b32.xlu0 %v23, 64
    %v279 = vpop.permute.xlu0 %278
    %280 = vrot.lane.b32.xlu0 %v24, 64
    %v281 = vpop.permute.xlu0 %280
    %282 = vrot.lane.b32.xlu0 %v25, 64
    %v283 = vpop.permute.xlu0 %282
    %v289 = vsel %vm32, %v273, 0
    %291 = vmatpush.msra.mxu0 0.0
    %292 = vmatpush.msra.mxu0 0.0
    %293 = vmatpush.msra.mxu0 0.0
    %294 = vmatpush.msra.mxu0 0.0
    %295 = vmatpush.msra.mxu0 0.0
    %296 = vmatpush.msra.mxu0 0.0
    %297 = vmatpush.msra.mxu0 0.0
    %298 = vmatpush.msra.mxu0 0.0
    %299 = vmatpush.msra.mxu0 0.0
    %300 = vmatpush.msra.mxu0 0.0
    %301 = vmatpush.msra.mxu0 0.0
    %302 = vmatpush.msra.mxu0 0.0
    %303 = vmatpush.msra.mxu0 %v283
    %304 = vmatpush.msra.mxu0 %v281
    %305 = vmatpush.msra.mxu0 %v279
    %306 = vmatpush.msra.mxu0 %v277
    %307 = vmatmul.f32.gmra.mxu0 %v289
    %v308 = vpop.f32.mrf.mxu0
    %v309 = vadd.f32 %v275, %v308
    %310 = vdwg.mxu0
    %v311 = vmax.f32 %v309, 0.0
    %v312 = vld [vmem:[%s3] sm:$0xff]
    %v313 = vld [vmem:[%s3 + $0x8] sm:$0xff]
    %v314 = vld [vmem:[%s3 + $0x10] sm:$0xff]
    %v315 = vld [vmem:[%s3 + $0x18] sm:$0xff]
    %v316 = vld [vmem:[%s3 + $0x20] sm:$0xff]
    %v317 = vld [vmem:[%s3 + $0x28] sm:$0xff]
    %v318 = vld [vmem:[%s3 + $0x30] sm:$0xff]
    %v319 = vld [vmem:[%s3 + $0x38] sm:$0xff]
    %321 = vrot.lane.b32.xlu0 %v275, 64
    %v322 = vpop.permute.xlu0 %321
    %vm324 = vcmask 523264
    %v326 = vsel %vm324, %v311, 0
    %328 = vmatpush.msra.mxu0 0.0
    %329 = vmatpush.msra.mxu0 0.0
    %330 = vmatpush.msra.mxu0 0.0
    %331 = vmatpush.msra.mxu0 0.0
    %332 = vmatpush.msra.mxu0 0.0
    %333 = vmatpush.msra.mxu0 0.0
    %334 = vmatpush.msra.mxu0 0.0
    %335 = vmatpush.msra.mxu0 0.0
    %336 = vmatpush.msra.mxu0 %v319
    %337 = vmatpush.msra.mxu0 %v318
    %338 = vmatpush.msra.mxu0 %v317
    %339 = vmatpush.msra.mxu0 %v316
    %340 = vmatpush.msra.mxu0 %v315
    %341 = vmatpush.msra.mxu0 %v314
    %342 = vmatpush.msra.mxu0 %v313
    %343 = vmatpush.msra.mxu0 %v312
    %344 = vmatmul.f32.gmra.mxu0 %v326
    %v345 = vpop.f32.mrf.mxu0
    %v346 = vadd.f32 %v322, %v345
    %347 = vdwg.mxu0
    %v348 = vadd.f32 %v223, %v346
    %vm349 = vcmask 254976
    %350 = vst.msk [vmem:[#allocation2] sm:$0x3] %vm349, %v348
    // Predicated region
    $region22: #{block_forward.1} parent=1 // pred_check
      _
    $region23: #{block_forward.1} parent=1 // pred_check_branch
      %352 = sbr.rel (0) target = $region25
    $region24: #{block_forward.1} parent=1 // pred_region
      %354 = vsyncadd [#allocation3], 0
      %s356 = sshll.u32 [#allocation2], 4
      %s357 = int_to_ptr.vmem [resolvable:$true] %s356
      %s358 = sshll.u32 %s5, 4
      %s359 = int_to_ptr.hbm [resolvable:$true] %s358
      %361 = dma.vmem_to_hbm [thread:$0]  %s357, 32, %s359, [#allocation3]
    $region25: #{block_forward.1} parent=1 // pred_fallthru
      _
    // Predicated region
    $region26: #{block_forward.1} parent=1 // pred_check
      _
    $region27: #{block_forward.1} parent=1 // pred_check_branch
      %363 = sbr.rel (0) target = $region29
    $region28: #{block_forward.1} parent=1 // pred_region
      %365 = dma.done [#allocation3], 32
    $region29: #{block_forward.1} parent=1 // pred_fallthru
      _
    %366 = vsyncpa [#allocation3], 1

</llo_original>
